<compile_context>
chip_gen: v6e
topology: v6e:2x2x1
jax: 0.10.0
libtpu: 0.0.40
codegen_flags: <defaults>
</compile_context>

<pallas_src>
import functools

import jax
import jax.numpy as jnp
from jax import lax
from jax.experimental import pallas as pl
from jax.experimental.pallas import tpu as pltpu


def _shift_left(x, s):
    """out[:, i] = x[:, (i + s) mod n] for a static integer shift s."""
    n = x.shape[-1]
    s = s % n
    if s == 0:
        return x
    return jnp.concatenate([x[:, s:], x[:, :s]], axis=1)


def _dense_layer_kernel(coords_ref, x_ref, w_ref, b_ref, o_ref, *, H, W):
    """Fused conv3x3(pad=1) + bias + ReLU + channel-concat for one image.

    coords_ref: (2, H*W) int32   row 0 = h index, row 1 = w index per column
    x_ref     : (1, Cin, H*W)    input image, channels-major, spatial flat
    w_ref     : (Cout, 9*Cin)    conv weight, rows ordered (ky, kx, cin)
    b_ref     : (Cout, 1)        bias
    o_ref     : (1, Cin+Cout, H*W)  [x ; relu(conv(x))] along channels
    """
    x = x_ref[0].astype(jnp.float32)           # (Cin, H*W)
    coords = coords_ref[...]                    # (2, H*W)
    h_idx = coords[0:1, :]                      # (1, H*W)
    w_idx = coords[1:2, :]                      # (1, H*W)

    # im2col in "CHW" orientation: rows (ky, kx, cin), columns h*W + w.
    # Tap (ky, kx) is a circular lane-shift of the flattened image by
    # (ky-1)*W + (kx-1); out-of-image positions are masked to zero, which
    # implements the padding=1 halo entirely inside the kernel.
    taps = []
    for ky in range(3):
        for kx in range(3):
            dy, dx = ky - 1, kx - 1
            shifted = _shift_left(x, dy * W + dx)
            conds = []
            if dy < 0:
                conds.append(h_idx >= -dy)
            if dy > 0:
                conds.append(h_idx < H - dy)
            if dx < 0:
                conds.append(w_idx >= -dx)
            if dx > 0:
                conds.append(w_idx < W - dx)
            tap = shifted
            if conds:
                valid = functools.reduce(lambda a, b: a & b, conds)
                tap = jnp.where(valid, shifted, 0.0)
            taps.append(tap)
    patches = jnp.concatenate(taps, axis=0)     # (9*Cin, H*W)

    # Single MXU matmul, K = 9*Cin, lane-dense (Cout, H*W) result.
    conv = jnp.dot(w_ref[...], patches, preferred_element_type=jnp.float32)
    conv = jnp.maximum(conv + b_ref[...], 0.0)  # bias + ReLU

    # Fused concat([x, relu(conv)]) along channels; single lane-dense store.
    o_ref[0] = jnp.concatenate([x, conv], axis=0).astype(o_ref.dtype)


def dense_layer_forward(x_nchw, weight, bias):
    """Equivalent of DenseLayer.forward: cat([x, relu(conv3x3(x))], dim=1).

    x_nchw : (N, Cin, H, W)    float32
    weight : (Cout, Cin, 3, 3) float32 (PyTorch conv weight layout)
    bias   : (Cout,)           float32
    returns: (N, Cin + Cout, H, W)
    """
    N, Cin, H, W = x_nchw.shape
    Cout = weight.shape[0]
    HW = H * W
    Ctot = Cin + Cout

    # Metadata-only reshape (NCHW is already channels-major, row-major).
    x_flat = x_nchw.reshape(N, Cin, HW)
    # (Cout, Cin, 3, 3) -> (Cout, 3, 3, Cin) -> (Cout, 9*Cin); tiny, one-time.
    w_mat = jnp.transpose(weight, (0, 2, 3, 1)).reshape(Cout, 9 * Cin)
    b_col = bias.reshape(Cout, 1)

    # Per-column (h, w) coordinates for the in-kernel border masks.
    h_coord = jnp.repeat(jnp.arange(H, dtype=jnp.int32), W)
    w_coord = jnp.tile(jnp.arange(W, dtype=jnp.int32), H)
    coords = jnp.stack([h_coord, w_coord], axis=0)   # (2, H*W) int32

    kernel = functools.partial(_dense_layer_kernel, H=H, W=W)

    out_flat = pl.pallas_call(
        kernel,
        out_shape=jax.ShapeDtypeStruct((N, Ctot, HW), x_nchw.dtype),
        grid_spec=pltpu.PrefetchScalarGridSpec(
            num_scalar_prefetch=0,
            grid=(N,),
            in_specs=[
                pl.BlockSpec((2, HW), lambda n: (0, 0)),
                pl.BlockSpec((1, Cin, HW), lambda n: (n, 0, 0)),
                pl.BlockSpec((Cout, 9 * Cin), lambda n: (0, 0)),
                pl.BlockSpec((Cout, 1), lambda n: (0, 0)),
            ],
            out_specs=pl.BlockSpec((1, Ctot, HW), lambda n: (n, 0, 0)),
        ),
        compiler_params=pltpu.CompilerParams(
            dimension_semantics=("parallel",)),
    )(coords, x_flat, w_mat, b_col)

    # Metadata-only reshape back to NCHW.
    return out_flat.reshape(N, Ctot, H, W)


def _reference(x_nchw, weight, bias):
    # Pure-JAX reference (NCHW conv) for correctness check.
    y = lax.conv_general_dilated(
        x_nchw, weight,
        window_strides=(1, 1),
        padding=((1, 1), (1, 1)),
        dimension_numbers=("NCHW", "OIHW", "NCHW"),
    ) + bias.reshape(1, -1, 1, 1)
    return jnp.concatenate([x_nchw, jnp.maximum(y, 0.0)], axis=1)


if __name__ == "__main__":
    key = jax.random.PRNGKey(0)
    k_x, k_w, k_b = jax.random.split(key, 3)

    N, Cin, Cout, H, W = 2, 4, 8, 16, 16

    x = jax.random.normal(k_x, (N, Cin, H, W), dtype=jnp.float32)
    # Deterministic "kaiming-ish" init for the synthetic parameters.
    fan_in = Cin * 3 * 3
    weight = jax.random.normal(k_w, (Cout, Cin, 3, 3), dtype=jnp.float32) \
        * (1.0 / fan_in) ** 0.5
    bias = jax.random.normal(k_b, (Cout,), dtype=jnp.float32) * 0.01

    out = jax.block_until_ready(dense_layer_forward(x, weight, bias))

    ref = _reference(x, weight, bias)
    assert out.shape == (N, Cin + Cout, H, W)
    assert jnp.allclose(out, ref, atol=1e-5, rtol=1e-5), "mismatch vs reference"

    print("KERNEL_OK")
</pallas_src>

<mosaic_0001>
module attributes {stable_mosaic.version = 11 : i64} {
  func.func @_dense_layer_kernel(%arg0: i32, %arg1: memref<2x256xi32, #tpu.memory_space<vmem>>, %arg2: memref<1x4x256xf32, #tpu.memory_space<vmem>>, %arg3: memref<8x36xf32, #tpu.memory_space<vmem>>, %arg4: memref<8x1xf32, #tpu.memory_space<vmem>>, %arg5: memref<1x12x256xf32, #tpu.memory_space<vmem>>) attributes {dimension_semantics = [#tpu.dimension_semantics<parallel>], iteration_bounds = array<i64: 2>, scalar_prefetch = 0 : i64, scratch_operands = 0 : i64, tpu.core_type = #tpu.core_type<tc>, window_params = [{pipeline_mode = #tpu.pipeline_mode<synchronous>, transform_indices = @transform_0, window_bounds = array<i64: 2, 256>}, {transform_indices = @transform_1, window_bounds = array<i64: 1, 4, 256>}, {pipeline_mode = #tpu.pipeline_mode<synchronous>, transform_indices = @transform_2, window_bounds = array<i64: 8, 36>}, {pipeline_mode = #tpu.pipeline_mode<synchronous>, transform_indices = @transform_3, window_bounds = array<i64: 8, 1>}, {transform_indices = @transform_4, window_bounds = array<i64: 1, 12, 256>}]} {
    %c0 = arith.constant 0 : index
    %c0_0 = arith.constant 0 : index
    %c0_1 = arith.constant 0 : index
    %0 = vector.load %arg2[%c0, %c0_0, %c0_1] : memref<1x4x256xf32, #tpu.memory_space<vmem>>, vector<1x4x256xf32>
    %1 = vector.shape_cast %0 : vector<1x4x256xf32> to vector<4x256xf32>
    %c0_2 = arith.constant 0 : index
    %c0_3 = arith.constant 0 : index
    %2 = vector.load %arg1[%c0_2, %c0_3] : memref<2x256xi32, #tpu.memory_space<vmem>>, vector<2x256xi32>
    %3 = vector.extract_strided_slice %2 {offsets = [0, 0], sizes = [1, 256], strides = [1, 1]} : vector<2x256xi32> to vector<1x256xi32>
    %4 = vector.extract_strided_slice %2 {offsets = [1, 0], sizes = [1, 256], strides = [1, 1]} : vector<2x256xi32> to vector<1x256xi32>
    %5 = vector.extract_strided_slice %1 {offsets = [0, 239], sizes = [4, 17], strides = [1, 1]} : vector<4x256xf32> to vector<4x17xf32>
    %6 = vector.extract_strided_slice %1 {offsets = [0, 0], sizes = [4, 239], strides = [1, 1]} : vector<4x256xf32> to vector<4x239xf32>
    %7 = tpu.concatenate %5, %6 in 1 : vector<4x17xf32>, vector<4x239xf32> -> vector<4x256xf32>
    %c1_i32 = arith.constant 1 : i32
    %8 = vector.broadcast %c1_i32 : i32 to vector<1x256xi32>
    %9 = arith.cmpi sge, %3, %8 : vector<1x256xi32>
    %c1_i32_4 = arith.constant 1 : i32
    %10 = vector.broadcast %c1_i32_4 : i32 to vector<1x256xi32>
    %11 = arith.cmpi sge, %4, %10 : vector<1x256xi32>
    %12 = arith.andi %9, %11 : vector<1x256xi1>
    %cst = arith.constant 0.000000e+00 : f32
    %13 = vector.shape_cast %12 : vector<1x256xi1> to vector<1x256xi1>
    %14 = vector.broadcast %13 : vector<1x256xi1> to vector<4x256xi1>
    %15 = vector.broadcast %cst : f32 to vector<4x256xf32>
    %16 = arith.select %14, %7, %15 : vector<4x256xi1>, vector<4x256xf32>
    %17 = vector.extract_strided_slice %1 {offsets = [0, 240], sizes = [4, 16], strides = [1, 1]} : vector<4x256xf32> to vector<4x16xf32>
    %18 = vector.extract_strided_slice %1 {offsets = [0, 0], sizes = [4, 240], strides = [1, 1]} : vector<4x256xf32> to vector<4x240xf32>
    %19 = tpu.concatenate %17, %18 in 1 : vector<4x16xf32>, vector<4x240xf32> -> vector<4x256xf32>
    %c1_i32_5 = arith.constant 1 : i32
    %20 = vector.broadcast %c1_i32_5 : i32 to vector<1x256xi32>
    %21 = arith.cmpi sge, %3, %20 : vector<1x256xi32>
    %cst_6 = arith.constant 0.000000e+00 : f32
    %22 = vector.shape_cast %21 : vector<1x256xi1> to vector<1x256xi1>
    %23 = vector.broadcast %22 : vector<1x256xi1> to vector<4x256xi1>
    %24 = vector.broadcast %cst_6 : f32 to vector<4x256xf32>
    %25 = arith.select %23, %19, %24 : vector<4x256xi1>, vector<4x256xf32>
    %26 = vector.extract_strided_slice %1 {offsets = [0, 241], sizes = [4, 15], strides = [1, 1]} : vector<4x256xf32> to vector<4x15xf32>
    %27 = vector.extract_strided_slice %1 {offsets = [0, 0], sizes = [4, 241], strides = [1, 1]} : vector<4x256xf32> to vector<4x241xf32>
    %28 = tpu.concatenate %26, %27 in 1 : vector<4x15xf32>, vector<4x241xf32> -> vector<4x256xf32>
    %c1_i32_7 = arith.constant 1 : i32
    %29 = vector.broadcast %c1_i32_7 : i32 to vector<1x256xi32>
    %30 = arith.cmpi sge, %3, %29 : vector<1x256xi32>
    %c15_i32 = arith.constant 15 : i32
    %31 = vector.broadcast %c15_i32 : i32 to vector<1x256xi32>
    %32 = arith.cmpi slt, %4, %31 : vector<1x256xi32>
    %33 = arith.andi %30, %32 : vector<1x256xi1>
    %cst_8 = arith.constant 0.000000e+00 : f32
    %34 = vector.shape_cast %33 : vector<1x256xi1> to vector<1x256xi1>
    %35 = vector.broadcast %34 : vector<1x256xi1> to vector<4x256xi1>
    %36 = vector.broadcast %cst_8 : f32 to vector<4x256xf32>
    %37 = arith.select %35, %28, %36 : vector<4x256xi1>, vector<4x256xf32>
    %38 = vector.extract_strided_slice %1 {offsets = [0, 255], sizes = [4, 1], strides = [1, 1]} : vector<4x256xf32> to vector<4x1xf32>
    %39 = vector.extract_strided_slice %1 {offsets = [0, 0], sizes = [4, 255], strides = [1, 1]} : vector<4x256xf32> to vector<4x255xf32>
    %40 = tpu.concatenate %38, %39 in 1 : vector<4x1xf32>, vector<4x255xf32> -> vector<4x256xf32>
    %c1_i32_9 = arith.constant 1 : i32
    %41 = vector.broadcast %c1_i32_9 : i32 to vector<1x256xi32>
    %42 = arith.cmpi sge, %4, %41 : vector<1x256xi32>
    %cst_10 = arith.constant 0.000000e+00 : f32
    %43 = vector.shape_cast %42 : vector<1x256xi1> to vector<1x256xi1>
    %44 = vector.broadcast %43 : vector<1x256xi1> to vector<4x256xi1>
    %45 = vector.broadcast %cst_10 : f32 to vector<4x256xf32>
    %46 = arith.select %44, %40, %45 : vector<4x256xi1>, vector<4x256xf32>
    %47 = vector.extract_strided_slice %1 {offsets = [0, 1], sizes = [4, 255], strides = [1, 1]} : vector<4x256xf32> to vector<4x255xf32>
    %48 = vector.extract_strided_slice %1 {offsets = [0, 0], sizes = [4, 1], strides = [1, 1]} : vector<4x256xf32> to vector<4x1xf32>
    %49 = tpu.concatenate %47, %48 in 1 : vector<4x255xf32>, vector<4x1xf32> -> vector<4x256xf32>
    %c15_i32_11 = arith.constant 15 : i32
    %50 = vector.broadcast %c15_i32_11 : i32 to vector<1x256xi32>
    %51 = arith.cmpi slt, %4, %50 : vector<1x256xi32>
    %cst_12 = arith.constant 0.000000e+00 : f32
    %52 = vector.shape_cast %51 : vector<1x256xi1> to vector<1x256xi1>
    %53 = vector.broadcast %52 : vector<1x256xi1> to vector<4x256xi1>
    %54 = vector.broadcast %cst_12 : f32 to vector<4x256xf32>
    %55 = arith.select %53, %49, %54 : vector<4x256xi1>, vector<4x256xf32>
    %56 = vector.extract_strided_slice %1 {offsets = [0, 15], sizes = [4, 241], strides = [1, 1]} : vector<4x256xf32> to vector<4x241xf32>
    %57 = vector.extract_strided_slice %1 {offsets = [0, 0], sizes = [4, 15], strides = [1, 1]} : vector<4x256xf32> to vector<4x15xf32>
    %58 = tpu.concatenate %56, %57 in 1 : vector<4x241xf32>, vector<4x15xf32> -> vector<4x256xf32>
    %c15_i32_13 = arith.constant 15 : i32
    %59 = vector.broadcast %c15_i32_13 : i32 to vector<1x256xi32>
    %60 = arith.cmpi slt, %3, %59 : vector<1x256xi32>
    %c1_i32_14 = arith.constant 1 : i32
    %61 = vector.broadcast %c1_i32_14 : i32 to vector<1x256xi32>
    %62 = arith.cmpi sge, %4, %61 : vector<1x256xi32>
    %63 = arith.andi %60, %62 : vector<1x256xi1>
    %cst_15 = arith.constant 0.000000e+00 : f32
    %64 = vector.shape_cast %63 : vector<1x256xi1> to vector<1x256xi1>
    %65 = vector.broadcast %64 : vector<1x256xi1> to vector<4x256xi1>
    %66 = vector.broadcast %cst_15 : f32 to vector<4x256xf32>
    %67 = arith.select %65, %58, %66 : vector<4x256xi1>, vector<4x256xf32>
    %68 = vector.extract_strided_slice %1 {offsets = [0, 16], sizes = [4, 240], strides = [1, 1]} : vector<4x256xf32> to vector<4x240xf32>
    %69 = vector.extract_strided_slice %1 {offsets = [0, 0], sizes = [4, 16], strides = [1, 1]} : vector<4x256xf32> to vector<4x16xf32>
    %70 = tpu.concatenate %68, %69 in 1 : vector<4x240xf32>, vector<4x16xf32> -> vector<4x256xf32>
    %c15_i32_16 = arith.constant 15 : i32
    %71 = vector.broadcast %c15_i32_16 : i32 to vector<1x256xi32>
    %72 = arith.cmpi slt, %3, %71 : vector<1x256xi32>
    %cst_17 = arith.constant 0.000000e+00 : f32
    %73 = vector.shape_cast %72 : vector<1x256xi1> to vector<1x256xi1>
    %74 = vector.broadcast %73 : vector<1x256xi1> to vector<4x256xi1>
    %75 = vector.broadcast %cst_17 : f32 to vector<4x256xf32>
    %76 = arith.select %74, %70, %75 : vector<4x256xi1>, vector<4x256xf32>
    %77 = vector.extract_strided_slice %1 {offsets = [0, 17], sizes = [4, 239], strides = [1, 1]} : vector<4x256xf32> to vector<4x239xf32>
    %78 = vector.extract_strided_slice %1 {offsets = [0, 0], sizes = [4, 17], strides = [1, 1]} : vector<4x256xf32> to vector<4x17xf32>
    %79 = tpu.concatenate %77, %78 in 1 : vector<4x239xf32>, vector<4x17xf32> -> vector<4x256xf32>
    %c15_i32_18 = arith.constant 15 : i32
    %80 = vector.broadcast %c15_i32_18 : i32 to vector<1x256xi32>
    %81 = arith.cmpi slt, %3, %80 : vector<1x256xi32>
    %c15_i32_19 = arith.constant 15 : i32
    %82 = vector.broadcast %c15_i32_19 : i32 to vector<1x256xi32>
    %83 = arith.cmpi slt, %4, %82 : vector<1x256xi32>
    %84 = arith.andi %81, %83 : vector<1x256xi1>
    %cst_20 = arith.constant 0.000000e+00 : f32
    %85 = vector.shape_cast %84 : vector<1x256xi1> to vector<1x256xi1>
    %86 = vector.broadcast %85 : vector<1x256xi1> to vector<4x256xi1>
    %87 = vector.broadcast %cst_20 : f32 to vector<4x256xf32>
    %88 = arith.select %86, %79, %87 : vector<4x256xi1>, vector<4x256xf32>
    %89 = tpu.concatenate %16, %25, %37, %46, %1, %55, %67, %76, %88 in 0 : vector<4x256xf32>, vector<4x256xf32>, vector<4x256xf32>, vector<4x256xf32>, vector<4x256xf32>, vector<4x256xf32>, vector<4x256xf32>, vector<4x256xf32>, vector<4x256xf32> -> vector<36x256xf32>
    %c0_21 = arith.constant 0 : index
    %c0_22 = arith.constant 0 : index
    %90 = vector.load %arg3[%c0_21, %c0_22] : memref<8x36xf32, #tpu.memory_space<vmem>>, vector<8x36xf32>
    %cst_23 = arith.constant dense<0.000000e+00> : vector<8x256xf32>
    %91 = tpu.matmul %90, %89, %cst_23 {dimension_numbers = #tpu.dot_dimension_numbers<[1], [0], [0], [1], [0, 0, 1, 1], [], []>} : vector<8x36xf32>, vector<36x256xf32>, vector<8x256xf32> -> vector<8x256xf32>
    %c0_24 = arith.constant 0 : index
    %c0_25 = arith.constant 0 : index
    %92 = vector.load %arg4[%c0_24, %c0_25] : memref<8x1xf32, #tpu.memory_space<vmem>>, vector<8x1xf32>
    %93 = vector.broadcast %92 : vector<8x1xf32> to vector<8x256xf32>
    %94 = arith.addf %91, %93 : vector<8x256xf32>
    %cst_26 = arith.constant 0.000000e+00 : f32
    %95 = vector.broadcast %cst_26 : f32 to vector<8x256xf32>
    %96 = arith.maximumf %94, %95 : vector<8x256xf32>
    %97 = tpu.concatenate %1, %96 in 0 : vector<4x256xf32>, vector<8x256xf32> -> vector<12x256xf32>
    %c0_27 = arith.constant 0 : index
    %c0_28 = arith.constant 0 : index
    %c0_29 = arith.constant 0 : index
    %98 = vector.load %arg5[%c0_27, %c0_28, %c0_29] : memref<1x12x256xf32, #tpu.memory_space<vmem>>, vector<1x12x256xf32>
    %99 = vector.shape_cast %98 : vector<1x12x256xf32> to vector<12x256xf32>
    %100 = vector.shape_cast %97 : vector<12x256xf32> to vector<1x12x256xf32>
    tpu.vector_store %arg5[%c0_27, %c0_28, %c0_29], %100 {strides = array<i32>} : memref<1x12x256xf32, #tpu.memory_space<vmem>>, vector<1x12x256xf32>,
    return
  }
  func.func @transform_0(%arg0: i32) -> (i32, i32) {
    %c0_i32 = arith.constant 0 : i32
    %c0_i32_0 = arith.constant 0 : i32
    %c0_i32_1 = arith.constant 0 : i32
    return %c0_i32, %c0_i32_0 : i32, i32
  }
  func.func @transform_1(%arg0: i32) -> (i32, i32, i32) {
    %c0_i32 = arith.constant 0 : i32
    %c0_i32_0 = arith.constant 0 : i32
    %c0_i32_1 = arith.constant 0 : i32
    return %arg0, %c0_i32, %c0_i32_0 : i32, i32, i32
  }
  func.func @transform_2(%arg0: i32) -> (i32, i32) {
    %c0_i32 = arith.constant 0 : i32
    %c0_i32_0 = arith.constant 0 : i32
    %c0_i32_1 = arith.constant 0 : i32
    return %c0_i32, %c0_i32_0 : i32, i32
  }
  func.func @transform_3(%arg0: i32) -> (i32, i32) {
    %c0_i32 = arith.constant 0 : i32
    %c0_i32_0 = arith.constant 0 : i32
    %c0_i32_1 = arith.constant 0 : i32
    return %c0_i32, %c0_i32_0 : i32, i32
  }
  func.func @transform_4(%arg0: i32) -> (i32, i32, i32) {
    %c0_i32 = arith.constant 0 : i32
    %c0_i32_0 = arith.constant 0 : i32
    %c0_i32_1 = arith.constant 0 : i32
    return %arg0, %c0_i32, %c0_i32_0 : i32, i32, i32
  }
}

</mosaic_0001>

<llo_original>
// kernel: tpu_custom_call.1
$region0: #{tpu_custom_call.1}
  #allocation0 [shape = 'u32[]', space=smem, size = 0x4, offset = 0x4, fixed_abs, tag = 'smem constant byte address 0x4 - core index']
  #allocation1 [shape = 'u32[144,128]{1,0:T(1,128)}', space=vmem, size = 0x12000, scoped, tag = 'internal scratch']
  %s0 = inlined_call_operand.vmem [shape: s32[2,256], index: 0, kind: input, shape index: {}]
  %s1 = inlined_call_operand.hbm [shape: f32[2,4,256], index: 1, kind: input, shape index: {}]
  %s2 = inlined_call_operand.vmem [shape: f32[8,36], index: 2, kind: input, shape index: {}]
  %s3 = inlined_call_operand.vmem [shape: f32[8,1], index: 3, kind: input, shape index: {}]
  %s4 = inlined_call_operand.vmem [shape: f32[2,12,256], index: 4, kind: output, shape index: {}]
  %s5 = sld [smem:[#allocation0]]
  $region53: #{tpu_custom_call.1} parent=0
    _
  %s7 = ssub.s32 1, %s5
  %s8 = scalar_select 0, %s7, %s5
  $region1: #{tpu_custom_call.1} parent=0
    #allocation2 [shape = 'u8[8192]{0}', space=vmem, size = 0x2000, scoped, tag = 'input window, operand 1']
    #allocation3 [shape = 's32[2]{0}', space=sflag, size = 0x8, scoped, tag = 'scoped memory for tpu_custom_call.1']
    %9 = vsyncpa [#allocation3], 0
    %s10 = scalar_lea.sflag [#allocation3], 1
    %11 = vsyncpa %s10, 0
    loop: start=0, step=1, limit=4
    $region2: #{tpu_custom_call.1} parent=1 // loop_pre_header
      _
    $region3: #{tpu_custom_call.1} parent=1 // loop_header
      %s13 = sphi 0, %s17
      %p14 = scmp.ge.s32.totalorder %s13, 4
      %s21 = sphi 0, %s21
      %s23 = sphi 0, %s21
      %s24 = sphi 0, %s23
      %s38 = sphi 0, %s24
      %s44 = sphi 0, %s46
      %s47 = sphi 0, %s44
      %s48 = sphi 0, %s47
      %s64 = sphi 0, %s48
      %s68 = sphi 0, %s68
      %s70 = sphi 0, %s68
      %s71 = sphi 0, %s70
      %s85 = sphi 0, %s71
      %s89 = sphi 0, %s89
      %s91 = sphi 0, %s89
      %s92 = sphi 0, %s91
      %s106 = sphi 0, %s92
      %s112 = sphi 0, %s114
      %s115 = sphi 0, %s112
      %s116 = sphi 0, %s115
      %s132 = sphi 0, %s116
    $region4: #{tpu_custom_call.1} parent=1 // loop_header_branch
      %16 = sbr.rel (%p14) target = $region8
    $region5: #{tpu_custom_call.1} parent=1 // loop_body
      %s18 = ssub.s32 %s13, 1
      %s19 = ssub.s32 %s13, 2
      %s20 = sadd.s32 %s13, 1
      %s22 = sadd.s32 %s21, 1
      %p25 = scmp.eq.s32.totalorder %s13, 1
      %p26 = scmp.ne.s32.totalorder %s21, %s23
      %p27 = scmp.eq.s32.totalorder %s13, 0
      %p28 = por %p26, %p27
      %p29 = scmp.ne.s32.totalorder %s21, %s23
      %p30 = scmp.eq.s32.totalorder %s18, 1
      %p31 = por %p29, %p30
      %p32 = scmp.ne.s32.totalorder %s23, %s24
      %p33 = scmp.eq.s32.totalorder %s18, 0
      %p34 = por %p32, %p33
      %p35 = scmp.ne.s32.totalorder %s23, %s24
      %p36 = scmp.eq.s32.totalorder %s19, 1
      %p37 = por %p35, %p36
      %p39 = scmp.ne.s32.totalorder %s24, %s38
      %p40 = scmp.eq.s32.totalorder %s19, 0
      %p41 = por %p39, %p40
      %s42 = ssub.s32 %s13, %s20
      %p43 = scmp.eq.s32.totalorder %s42, 0
      %s45 = sadd.s32 %s44, 1
      %s46 = scalar_select %p43, %s44, %s45
      %p49 = pneg %p43
      %p50 = scmp.eq.s32.totalorder %s13, 1
      %p51 = por %p49, %p50
      %p52 = scmp.ne.s32.totalorder %s44, %s47
      %p53 = scmp.eq.s32.totalorder %s13, 0
      %p54 = por %p52, %p53
      %p55 = scmp.ne.s32.totalorder %s44, %s47
      %p56 = scmp.eq.s32.totalorder %s18, 1
      %p57 = por %p55, %p56
      %p58 = scmp.ne.s32.totalorder %s47, %s48
      %p59 = scmp.eq.s32.totalorder %s18, 0
      %p60 = por %p58, %p59
      %p61 = scmp.ne.s32.totalorder %s47, %s48
      %p62 = scmp.eq.s32.totalorder %s19, 1
      %p63 = por %p61, %p62
      %p65 = scmp.ne.s32.totalorder %s48, %s64
      %p66 = scmp.eq.s32.totalorder %s19, 0
      %p67 = por %p65, %p66
      %s69 = sadd.s32 %s68, 1
      %p72 = scmp.eq.s32.totalorder %s13, 1
      %p73 = scmp.ne.s32.totalorder %s68, %s70
      %p74 = scmp.eq.s32.totalorder %s13, 0
      %p75 = por %p73, %p74
      %p76 = scmp.ne.s32.totalorder %s68, %s70
      %p77 = scmp.eq.s32.totalorder %s18, 1
      %p78 = por %p76, %p77
      %p79 = scmp.ne.s32.totalorder %s70, %s71
      %p80 = scmp.eq.s32.totalorder %s18, 0
      %p81 = por %p79, %p80
      %p82 = scmp.ne.s32.totalorder %s70, %s71
      %p83 = scmp.eq.s32.totalorder %s19, 1
      %p84 = por %p82, %p83
      %p86 = scmp.ne.s32.totalorder %s71, %s85
      %p87 = scmp.eq.s32.totalorder %s19, 0
      %p88 = por %p86, %p87
      %s90 = sadd.s32 %s89, 1
      %p93 = scmp.eq.s32.totalorder %s13, 1
      %p94 = scmp.ne.s32.totalorder %s89, %s91
      %p95 = scmp.eq.s32.totalorder %s13, 0
      %p96 = por %p94, %p95
      %p97 = scmp.ne.s32.totalorder %s89, %s91
      %p98 = scmp.eq.s32.totalorder %s18, 1
      %p99 = por %p97, %p98
      %p100 = scmp.ne.s32.totalorder %s91, %s92
      %p101 = scmp.eq.s32.totalorder %s18, 0
      %p102 = por %p100, %p101
      %p103 = scmp.ne.s32.totalorder %s91, %s92
      %p104 = scmp.eq.s32.totalorder %s19, 1
      %p105 = por %p103, %p104
      %p107 = scmp.ne.s32.totalorder %s92, %s106
      %p108 = scmp.eq.s32.totalorder %s19, 0
      %p109 = por %p107, %p108
      %s110 = ssub.s32 %s13, %s20
      %p111 = scmp.eq.s32.totalorder %s110, 0
      %s113 = sadd.s32 %s112, 1
      %s114 = scalar_select %p111, %s112, %s113
      %p117 = pneg %p111
      %p118 = scmp.eq.s32.totalorder %s13, 1
      %p119 = por %p117, %p118
      %p120 = scmp.ne.s32.totalorder %s112, %s115
      %p121 = scmp.eq.s32.totalorder %s13, 0
      %p122 = por %p120, %p121
      %p123 = scmp.ne.s32.totalorder %s112, %s115
      %p124 = scmp.eq.s32.totalorder %s18, 1
      %p125 = por %p123, %p124
      %p126 = scmp.ne.s32.totalorder %s115, %s116
      %p127 = scmp.eq.s32.totalorder %s18, 0
      %p128 = por %p126, %p127
      %p129 = scmp.ne.s32.totalorder %s115, %s116
      %p130 = scmp.eq.s32.totalorder %s19, 1
      %p131 = por %p129, %p130
      %p133 = scmp.ne.s32.totalorder %s116, %s132
      %p134 = scmp.eq.s32.totalorder %s19, 0
      %p135 = por %p133, %p134
      %p136 = scmp.le.s32.totalorder 1, %s13
      %p137 = scmp.lt.s32.totalorder %s13, 3
      %p138 = pnand %p136, %p137
      %p139 = pneg %p138
      // Predicated region
      $region9: #{tpu_custom_call.1} parent=5 // pred_check
        _
      $region10: #{tpu_custom_call.1} parent=5 // pred_check_branch
        %141 = sbr.rel (%p138) target = $region12
      $region11: #{tpu_custom_call.1} parent=5 // pred_region
        %s142 = ssub.s32 %s13, 1
        // Predicated region
        $region13: #{tpu_custom_call.1} parent=11 // pred_check
          %p143 = pneg %p34
        $region14: #{tpu_custom_call.1} parent=11 // pred_check_branch
          %145 = sbr.rel (%p143) target = $region16
        $region15: #{tpu_custom_call.1} parent=11 // pred_region
          _
        $region16: #{tpu_custom_call.1} parent=11 // pred_fallthru
          _
        // Predicated region
        $region17: #{tpu_custom_call.1} parent=11 // pred_check
          %p146 = pneg %p81
        $region18: #{tpu_custom_call.1} parent=11 // pred_check_branch
          %148 = sbr.rel (%p146) target = $region20
        $region19: #{tpu_custom_call.1} parent=11 // pred_region
          _
        $region20: #{tpu_custom_call.1} parent=11 // pred_fallthru
          _
        // Predicated region
        $region21: #{tpu_custom_call.1} parent=11 // pred_check
          %p149 = pneg %p102
        $region22: #{tpu_custom_call.1} parent=11 // pred_check_branch
          %151 = sbr.rel (%p149) target = $region24
        $region23: #{tpu_custom_call.1} parent=11 // pred_region
          _
        $region24: #{tpu_custom_call.1} parent=11 // pred_fallthru
          _
      $region12: #{tpu_custom_call.1} parent=5 // pred_fallthru
        _
      %p152 = scmp.lt.s32.totalorder %s13, 2
      // Predicated region
      $region25: #{tpu_custom_call.1} parent=5 // pred_check
        %p153 = pneg %p152
      $region26: #{tpu_custom_call.1} parent=5 // pred_check_branch
        %155 = sbr.rel (%p153) target = $region28
      $region27: #{tpu_custom_call.1} parent=5 // pred_region
        // Predicated region
        $region29: #{tpu_custom_call.1} parent=27 // pred_check
          %p156 = pneg %p54
        $region30: #{tpu_custom_call.1} parent=27 // pred_check_branch
          %158 = sbr.rel (%p156) target = $region32
        $region31: #{tpu_custom_call.1} parent=27 // pred_region
          %s159 = sand.u32 %s44, 1
          %s160 = scalar_lea.sflag [#allocation3], %s159
          %s161 = sand.u32 %s44, 1
          %s162 = smul.addr %s161, 8
          %s163 = scalar_lea.vmem [#allocation2], %s162
          %s165 = ssub.s32 128, 128
          %166 = vsyncadd %s160, %s165
          %s167 = smul.addr %s13, 2
          %s168 = smul.addr %s167, 64
          %s169 = scalar_lea.hbm %s1, %s168
          %s171 = sshll.u32 %s163, 4
          %s172 = int_to_ptr.vmem [resolvable:$true] %s171
          %174 = dma.hbm_to_vmem [thread:$0]  %s169, 128, %s172, %s160
        $region32: #{tpu_custom_call.1} parent=27 // pred_fallthru
          _
      $region28: #{tpu_custom_call.1} parent=5 // pred_fallthru
        _
      %p175 = scmp.le.s32.totalorder 1, %s13
      %p176 = scmp.lt.s32.totalorder %s13, 3
      %p177 = pnand %p175, %p176
      %p178 = pneg %p177
      // Predicated region
      $region33: #{tpu_custom_call.1} parent=5 // pred_check
        _
      $region34: #{tpu_custom_call.1} parent=5 // pred_check_branch
        %180 = sbr.rel (%p177) target = $region36
      $region35: #{tpu_custom_call.1} parent=5 // pred_region
        %s181 = ssub.s32 %s13, 1
        %s182 = sand.u32 %s47, 1
        %s183 = scalar_lea.sflag [#allocation3], %s182
        %s184 = sand.u32 %s47, 1
        %s185 = smul.addr %s184, 8
        %s186 = scalar_lea.vmem [#allocation2], %s185
        // Predicated region
        $region37: #{tpu_custom_call.1} parent=35 // pred_check
          %p187 = pneg %p60
        $region38: #{tpu_custom_call.1} parent=35 // pred_check_branch
          %189 = sbr.rel (%p187) target = $region40
        $region39: #{tpu_custom_call.1} parent=35 // pred_region
          %190 = dma.done %s183, 128
        $region40: #{tpu_custom_call.1} parent=35 // pred_fallthru
          _
        %p191 = pneg %p34
        %p192 = pneg %p31
        %s193 = sand.u32 %s47, 1
        %s194 = scalar_lea.sflag [#allocation3], %s193
        %s195 = sand.u32 %s47, 1
        %s196 = smul.addr %s195, 8
        %s197 = scalar_lea.vmem [#allocation2], %s196
        %p198 = pneg %p60
        %p199 = pneg %p57
        %p200 = pneg %p81
        %p201 = pneg %p78
        %p202 = pneg %p102
        %p203 = pneg %p99
        %p204 = pneg %p128
        %p205 = pneg %p125
        %p206 = scmp.lt.s32.totalorder %s18, 1
        %s207 = scalar_select %p206, %s18, 1
        %s208 = smul.addr %s207, 4
        %s209 = smul.addr %s208, 8
        %s210 = scalar_lea.vmem %s4, %s209
        %p211 = scmp.lt.s32.totalorder %s18, 1
        %s212 = scalar_select %p211, %s18, 1
        %s213 = smul.addr %s212, 4
        %s214 = smul.addr %s213, 8
        %s215 = scalar_lea.vmem %s4, %s214
        %v216 = vld [vmem:[%s186] sm:$0xff]
        %v217 = vld [vmem:[%s0] sm:$0xf]
        %v219 = vcombine.high %v216, %v216
        %220 = vrot.lane.b32.xlu0 %v219, 17
        %v221 = vpop.permute.xlu0 %220
        %223 = vrot.lane.b32.xlu0 %v216, 17
        %v224 = vpop.permute.xlu0 %223
        %vm225 = vcmask 138240
        %v226 = vsel %vm225, %v224, %v221
        %v229 = vsel %vm225, %v221, %v224
        %vm230 = vcmp.ge.s32.totalorder %v217, 1
        %v231 = vsel %vm230, 1, 0
        %v232 = vrot.slane %v231, 7
        %v233 = vrot.slane %v232, 2
        %vm234 = vcmp.ne.s32.totalorder %v233, 0
        %vm235 = vmand %vm230, %vm234
        %v236 = vsel %vm235, 1, 0
        %v237 = vlaneseq
        %v238 = vshrl.u32 %v237, 7
        %v239 = vsub.s32 0, %v238
        %v240 = vrot.slane %v236, %v239
        %v241 = vlaneseq
        %v242 = vshrl.u32 %v241, 7
        %v243 = vsub.s32 2, %v242
        %v244 = vrot.slane %v236, %v243
        %v245 = vlaneseq
        %v246 = vshrl.u32 %v245, 7
        %v247 = vsub.s32 0, %v246
        %v248 = vrot.slane %v240, %v247
        %v249 = vlaneseq
        %v250 = vshrl.u32 %v249, 7
        %v251 = vsub.s32 0, %v250
        %v252 = vrot.slane %v244, %v251
        %vm253 = vcmp.eq.s32.totalorder %v248, 1
        %vm254 = vcmp.eq.s32.totalorder %v252, 1
        %v255 = vsel %vm253, %v229, 0.0
        %v256 = vsel %vm254, %v226, 0.0
        %257 = vrot.lane.b32.xlu0 %v219, 16
        %v258 = vpop.permute.xlu0 %257
        %260 = vrot.lane.b32.xlu0 %v216, 16
        %v261 = vpop.permute.xlu0 %260
        %vm262 = vcmask 130048
        %v263 = vsel %vm262, %v261, %v258
        %v266 = vsel %vm262, %v258, %v261
        %v267 = vlaneseq
        %v268 = vshrl.u32 %v267, 7
        %v269 = vsub.s32 0, %v268
        %v270 = vrot.slane %v231, %v269
        %v271 = vlaneseq
        %v272 = vshrl.u32 %v271, 7
        %v273 = vsub.s32 2, %v272
        %v274 = vrot.slane %v231, %v273
        %v275 = vlaneseq
        %v276 = vshrl.u32 %v275, 7
        %v277 = vsub.s32 0, %v276
        %v278 = vrot.slane %v270, %v277
        %v279 = vlaneseq
        %v280 = vshrl.u32 %v279, 7
        %v281 = vsub.s32 0, %v280
        %v282 = vrot.slane %v274, %v281
        %vm283 = vcmp.eq.s32.totalorder %v278, 1
        %vm284 = vcmp.eq.s32.totalorder %v282, 1
        %v285 = vsel %vm283, %v266, 0.0
        %v286 = vsel %vm284, %v263, 0.0
        %287 = vrot.lane.b32.xlu0 %v219, 15
        %v288 = vpop.permute.xlu0 %287
        %290 = vrot.lane.b32.xlu0 %v216, 15
        %v291 = vpop.permute.xlu0 %290
        %vm292 = vcmask 121856
        %v293 = vsel %vm292, %v291, %v288
        %v296 = vsel %vm292, %v288, %v291
        %vm297 = vcmp.lt.s32.totalorder %v217, 15
        %v298 = vsel %vm297, 1, 0
        %v299 = vrot.slane %v298, 7
        %v300 = vrot.slane %v299, 2
        %vm301 = vcmp.ne.s32.totalorder %v300, 0
        %vm302 = vmand %vm230, %vm301
        %v303 = vsel %vm302, 1, 0
        %v304 = vlaneseq
        %v305 = vshrl.u32 %v304, 7
        %v306 = vsub.s32 0, %v305
        %v307 = vrot.slane %v303, %v306
        %v308 = vlaneseq
        %v309 = vshrl.u32 %v308, 7
        %v310 = vsub.s32 2, %v309
        %v311 = vrot.slane %v303, %v310
        %v312 = vlaneseq
        %v313 = vshrl.u32 %v312, 7
        %v314 = vsub.s32 0, %v313
        %v315 = vrot.slane %v307, %v314
        %v316 = vlaneseq
        %v317 = vshrl.u32 %v316, 7
        %v318 = vsub.s32 0, %v317
        %v319 = vrot.slane %v311, %v318
        %vm320 = vcmp.eq.s32.totalorder %v315, 1
        %vm321 = vcmp.eq.s32.totalorder %v319, 1
        %v322 = vsel %vm320, %v296, 0.0
        %v323 = vsel %vm321, %v293, 0.0
        %324 = vrot.lane.b32.xlu0 %v219, 1
        %v325 = vpop.permute.xlu0 %324
        %327 = vrot.lane.b32.xlu0 %v216, 1
        %v328 = vpop.permute.xlu0 %327
        %vm329 = vcmask 7168
        %v330 = vsel %vm329, %v328, %v325
        %v333 = vsel %vm329, %v325, %v328
        %v334 = vlaneseq
        %v335 = vshrl.u32 %v334, 7
        %v336 = vsub.s32 1, %v335
        %v337 = vrot.slane %v231, %v336
        %v338 = vlaneseq
        %v339 = vshrl.u32 %v338, 7
        %v340 = vsub.s32 3, %v339
        %v341 = vrot.slane %v231, %v340
        %v342 = vlaneseq
        %v343 = vshrl.u32 %v342, 7
        %v344 = vsub.s32 1, %v343
        %v345 = vrot.slane %v337, %v344
        %v346 = vlaneseq
        %v347 = vshrl.u32 %v346, 7
        %v348 = vsub.s32 1, %v347
        %v349 = vrot.slane %v341, %v348
        %vm350 = vcmp.eq.s32.totalorder %v345, 1
        %vm351 = vcmp.eq.s32.totalorder %v349, 1
        %v352 = vsel %vm350, %v333, 0.0
        %v353 = vsel %vm351, %v330, 0.0
        %354 = vrot.lane.b32.xlu0 %v216, 127
        %v355 = vpop.permute.xlu0 %354
        %356 = vrot.lane.b32.xlu0 %v219, 127
        %v357 = vpop.permute.xlu0 %356
        %vm358 = vcmask 1039360
        %v359 = vsel %vm358, %v355, %v357
        %v363 = vsel %vm358, %v357, %v355
        %v364 = vlaneseq
        %v365 = vshrl.u32 %v364, 7
        %v366 = vsub.s32 1, %v365
        %v367 = vrot.slane %v298, %v366
        %v368 = vlaneseq
        %v369 = vshrl.u32 %v368, 7
        %v370 = vsub.s32 3, %v369
        %v371 = vrot.slane %v298, %v370
        %v372 = vlaneseq
        %v373 = vshrl.u32 %v372, 7
        %v374 = vsub.s32 1, %v373
        %v375 = vrot.slane %v367, %v374
        %v376 = vlaneseq
        %v377 = vshrl.u32 %v376, 7
        %v378 = vsub.s32 1, %v377
        %v379 = vrot.slane %v371, %v378
        %vm380 = vcmp.eq.s32.totalorder %v375, 1
        %vm381 = vcmp.eq.s32.totalorder %v379, 1
        %v382 = vsel %vm380, %v359, 0.0
        %v383 = vsel %vm381, %v363, 0.0
        %384 = vrot.lane.b32.xlu0 %v216, 113
        %v385 = vpop.permute.xlu0 %384
        %386 = vrot.lane.b32.xlu0 %v219, 113
        %v387 = vpop.permute.xlu0 %386
        %vm388 = vcmask 924672
        %v389 = vsel %vm388, %v385, %v387
        %v393 = vsel %vm388, %v387, %v385
        %vm394 = vmand %vm297, %vm234
        %v395 = vsel %vm394, 1, 0
        %v396 = vlaneseq
        %v397 = vshrl.u32 %v396, 7
        %v398 = vsub.s32 0, %v397
        %v399 = vrot.slane %v395, %v398
        %v400 = vlaneseq
        %v401 = vshrl.u32 %v400, 7
        %v402 = vsub.s32 2, %v401
        %v403 = vrot.slane %v395, %v402
        %v404 = vlaneseq
        %v405 = vshrl.u32 %v404, 7
        %v406 = vsub.s32 0, %v405
        %v407 = vrot.slane %v399, %v406
        %v408 = vlaneseq
        %v409 = vshrl.u32 %v408, 7
        %v410 = vsub.s32 0, %v409
        %v411 = vrot.slane %v403, %v410
        %vm412 = vcmp.eq.s32.totalorder %v407, 1
        %vm413 = vcmp.eq.s32.totalorder %v411, 1
        %v414 = vsel %vm412, %v389, 0.0
        %v415 = vsel %vm413, %v393, 0.0
        %416 = vrot.lane.b32.xlu0 %v216, 112
        %v417 = vpop.permute.xlu0 %416
        %418 = vrot.lane.b32.xlu0 %v219, 112
        %v419 = vpop.permute.xlu0 %418
        %vm420 = vcmask 916480
        %v421 = vsel %vm420, %v417, %v419
        %v425 = vsel %vm420, %v419, %v417
        %v426 = vlaneseq
        %v427 = vshrl.u32 %v426, 7
        %v428 = vsub.s32 0, %v427
        %v429 = vrot.slane %v298, %v428
        %v430 = vlaneseq
        %v431 = vshrl.u32 %v430, 7
        %v432 = vsub.s32 2, %v431
        %v433 = vrot.slane %v298, %v432
        %v434 = vlaneseq
        %v435 = vshrl.u32 %v434, 7
        %v436 = vsub.s32 0, %v435
        %v437 = vrot.slane %v429, %v436
        %v438 = vlaneseq
        %v439 = vshrl.u32 %v438, 7
        %v440 = vsub.s32 0, %v439
        %v441 = vrot.slane %v433, %v440
        %vm442 = vcmp.eq.s32.totalorder %v437, 1
        %vm443 = vcmp.eq.s32.totalorder %v441, 1
        %v444 = vsel %vm442, %v421, 0.0
        %v445 = vsel %vm443, %v425, 0.0
        %446 = vrot.lane.b32.xlu0 %v216, 111
        %v447 = vpop.permute.xlu0 %446
        %448 = vrot.lane.b32.xlu0 %v219, 111
        %v449 = vpop.permute.xlu0 %448
        %vm450 = vcmask 908288
        %v451 = vsel %vm450, %v447, %v449
        %v455 = vsel %vm450, %v449, %v447
        %vm456 = vmand %vm297, %vm301
        %v457 = vsel %vm456, 1, 0
        %v458 = vlaneseq
        %v459 = vshrl.u32 %v458, 7
        %v460 = vsub.s32 0, %v459
        %v461 = vrot.slane %v457, %v460
        %v462 = vlaneseq
        %v463 = vshrl.u32 %v462, 7
        %v464 = vsub.s32 2, %v463
        %v465 = vrot.slane %v457, %v464
        %v466 = vlaneseq
        %v467 = vshrl.u32 %v466, 7
        %v468 = vsub.s32 0, %v467
        %v469 = vrot.slane %v461, %v468
        %v470 = vlaneseq
        %v471 = vshrl.u32 %v470, 7
        %v472 = vsub.s32 0, %v471
        %v473 = vrot.slane %v465, %v472
        %vm474 = vcmp.eq.s32.totalorder %v469, 1
        %vm475 = vcmp.eq.s32.totalorder %v473, 1
        %v476 = vsel %vm474, %v451, 0.0
        %v477 = vsel %vm475, %v455, 0.0
        %v480 = vrot.slane %v285, 4
        %v481 = vrot.slane %v286, 4
        %v486 = vrot.slane %v352, 4
        %v487 = vrot.slane %v353, 4
        %v493 = vrot.slane %v382, 4
        %v494 = vrot.slane %v383, 4
        %v499 = vrot.slane %v444, 4
        %v500 = vrot.slane %v445, 4
        %vm503 = vcmask 1043456
        %v504 = vsel %vm503, %v255, %v480
        %v505 = vsel %vm503, %v256, %v481
        %v506 = vsel %vm503, %v322, %v486
        %v507 = vsel %vm503, %v323, %v487
        %v508 = vsel %vm503, %v216, %v493
        %v509 = vsel %vm503, %v219, %v494
        %v510 = vsel %vm503, %v414, %v499
        %v511 = vsel %vm503, %v415, %v500
        %v512 = vld [vmem:[%s2] sm:$0xff]
        %v513 = vld [vmem:[%s3] sm:$0xff]
        %515 = vset.pattern.permute.xlu0 0
        %516 = vperm.xlu0 %515, %v513
        %v517 = vpop.permute.xlu0 %516
        %vm519 = vcmask 293888
        %v521 = vsel %vm519, %v512, 0
        %v524 = vsel %vm503, %v476, 0
        %v527 = vsel %vm503, %v477, 0
        %529 = vmatprep.subr.mxu0 0.0
        %530 = vmatpush1.msra.mxu0 0.0
        %531 = vmatprep.subr.mxu0 0.0
        %532 = vmatpush1.msra.mxu0 0.0
        %533 = vmatprep.subr.mxu0 0.0
        %534 = vmatpush1.msra.mxu0 0.0
        %535 = vmatprep.subr.mxu0 0.0
        %536 = vmatpush1.msra.mxu0 0.0
        %537 = vmatprep.subr.mxu0 0.0
        %538 = vmatpush1.msra.mxu0 0.0
        %539 = vmatprep.subr.mxu0 0.0
        %540 = vmatpush1.msra.mxu0 0.0
        %541 = vmatprep.subr.mxu0 0.0
        %542 = vmatpush1.msra.mxu0 0.0
        %543 = vmatprep.subr.mxu0 0.0
        %544 = vmatpush1.msra.mxu0 0.0
        %545 = vmatprep.subr.mxu0 0.0
        %546 = vmatpush1.msra.mxu0 0.0
        %547 = vmatprep.subr.mxu0 0.0
        %548 = vmatpush1.msra.mxu0 0.0
        %549 = vmatprep.subr.mxu0 0.0
        %550 = vmatpush1.msra.mxu0 0.0
        %551 = vmatprep.subr.mxu0 %v527
        %552 = vmatpush1.msra.mxu0 %v524
        %553 = vmatprep.subr.mxu0 %v511
        %554 = vmatpush1.msra.mxu0 %v510
        %555 = vmatprep.subr.mxu0 %v509
        %556 = vmatpush1.msra.mxu0 %v508
        %557 = vmatprep.subr.mxu0 %v507
        %558 = vmatpush1.msra.mxu0 %v506
        %559 = vmatprep.subr.mxu0 %v505
        %560 = vmatpush1.msra.mxu0 %v504
        %561 = vmatprep.subr.mxu0 0.0
        %562 = vmatpush2.msra.mxu0 0.0
        %563 = vmatprep.subr.mxu0 0.0
        %564 = vmatpush2.msra.mxu0 0.0
        %565 = vmatprep.subr.mxu0 0.0
        %566 = vmatpush2.msra.mxu0 0.0
        %567 = vmatprep.subr.mxu0 0.0
        %568 = vmatpush2.msra.mxu0 0.0
        %569 = vmatprep.subr.mxu0 0.0
        %570 = vmatpush2.msra.mxu0 0.0
        %571 = vmatprep.subr.mxu0 0.0
        %572 = vmatpush2.msra.mxu0 0.0
        %573 = vmatprep.subr.mxu0 0.0
        %574 = vmatpush2.msra.mxu0 0.0
        %575 = vmatprep.subr.mxu0 0.0
        %576 = vmatpush2.msra.mxu0 0.0
        %577 = vmatprep.subr.mxu0 0.0
        %578 = vmatpush2.msra.mxu0 0.0
        %579 = vmatprep.subr.mxu0 0.0
        %580 = vmatpush2.msra.mxu0 0.0
        %581 = vmatprep.subr.mxu0 0.0
        %582 = vmatpush2.msra.mxu0 0.0
        %583 = vmatprep.subr.mxu0 0.0
        %584 = vmatpush2.msra.mxu0 0.0
        %585 = vmatprep.subr.mxu0 0.0
        %586 = vmatpush2.msra.mxu0 0.0
        %587 = vmatprep.subr.mxu0 0.0
        %588 = vmatpush2.msra.mxu0 0.0
        %589 = vmatprep.subr.mxu0 0.0
        %590 = vmatpush2.msra.mxu0 0.0
        %591 = vmatprep.subr.mxu0 0.0
        %592 = vmatpush2.msra.mxu0 0.0
        %593 = vmatprep.mubr.f32.mxu0 0.0
        %594 = vmatmul.mubr.f32.gmra.mxu0 %v521
        %v595 = vpop.f32.mrf.mxu0
        %v596 = vadd.f32 %v517, %v595
        %v597 = vpop.f32.mrf.mxu0
        %v598 = vadd.f32 %v517, %v597
        %599 = vdwg.mxu0
        %v600 = vmax.f32 %v596, 0.0
        %v601 = vmax.f32 %v598, 0.0
        %v604 = vrot.slane %v600, 4
        %v605 = vrot.slane %v601, 4
        %v608 = vsel %vm503, %v216, %v604
        %v609 = vsel %vm503, %v219, %v605
        %610 = vst [vmem:[%s215] sm:$0xff] %v608
        %611 = vst [vmem:[%s215 + $0x8] sm:$0xff] %v609
        %612 = vst [vmem:[%s215 + $0x10] sm:$0xf] %v604
        %613 = vst [vmem:[%s215 + $0x18] sm:$0xf] %v605
        %p614 = scmp.lt.s32.totalorder %s18, 1
        %s615 = scalar_select %p614, %s18, 1
        %s616 = smul.addr %s615, 4
        %s617 = smul.addr %s616, 8
        %s618 = scalar_lea.vmem %s4, %s617
        // Predicated region
        $region41: #{tpu_custom_call.1} parent=35 // pred_check
          %p619 = pneg %p125
        $region42: #{tpu_custom_call.1} parent=35 // pred_check_branch
          %621 = sbr.rel (%p619) target = $region44
        $region43: #{tpu_custom_call.1} parent=35 // pred_region
          _
        $region44: #{tpu_custom_call.1} parent=35 // pred_fallthru
          _
      $region36: #{tpu_custom_call.1} parent=5 // pred_fallthru
        _
      %p622 = scmp.le.s32.totalorder 2, %s13
      // Predicated region
      $region45: #{tpu_custom_call.1} parent=5 // pred_check
        %p623 = pneg %p622
      $region46: #{tpu_custom_call.1} parent=5 // pred_check_branch
        %625 = sbr.rel (%p623) target = $region48
      $region47: #{tpu_custom_call.1} parent=5 // pred_region
        %s626 = ssub.s32 %s13, 2
        // Predicated region
        $region49: #{tpu_custom_call.1} parent=47 // pred_check
          %p627 = pneg %p131
        $region50: #{tpu_custom_call.1} parent=47 // pred_check_branch
          %629 = sbr.rel (%p627) target = $region52
        $region51: #{tpu_custom_call.1} parent=47 // pred_region
          %p630 = scmp.lt.s32.totalorder %s19, 1
          %s631 = scalar_select %p630, %s19, 1
          %s632 = smul.addr %s631, 4
          %s633 = smul.addr %s632, 8
          %s634 = scalar_lea.vmem %s4, %s633
        $region52: #{tpu_custom_call.1} parent=47 // pred_fallthru
          _
      $region48: #{tpu_custom_call.1} parent=5 // pred_fallthru
        _
    $region6: #{tpu_custom_call.1} parent=1 // loop_footer
      %s17 = sadd.s32 1, %s13
    $region7: #{tpu_custom_call.1} parent=1 // loop_footer_branch
      %12 = sbr.rel target = $region3
    $region8: #{tpu_custom_call.1} parent=1 // loop_exit
      _
    %635 = vsyncpa [#allocation3], 1
    %s636 = scalar_lea.sflag [#allocation3], 1
    %637 = vsyncpa %s636, 1

</llo_original>
